<compile_context>
chip_gen: v7x
topology: tpu7x:2x2x1
jax: 0.10.0
libtpu: 0.0.40
codegen_flags: <defaults>
</compile_context>

<pallas_src>
import functools

import jax
import jax.numpy as jnp
from jax.experimental import pallas as pl
from jax.experimental.pallas import tpu as pltpu


def _block_diag_matmul_kernel(x_ref, w_ref, b_ref, o_ref):
    # x_ref: (tm, H*I)   -- tm rows of the flattened (B*T) axis
    # w_ref: (H*I, H*J)  -- block-diagonal dense weight (resident across grid)
    # b_ref: (1, H*J)    -- lane-dense bias row
    # o_ref: (tm, H*J)   -- lane-dense output tile
    acc = jnp.dot(x_ref[...], w_ref[...], preferred_element_type=jnp.float32)
    o_ref[...] = (acc + b_ref[...].astype(jnp.float32)).astype(o_ref.dtype)


@functools.partial(jax.jit, static_argnames=("tm", "compute_dtype"))
def block_diag_einsum(x, w, b, tm=None, compute_dtype=None):
    """Computes einsum('... h i, h i j -> ... h j', x, w) + b with Pallas.

    Args:
      x: [B, T, H, I]
      w: [H, I, J]
      b: [H, J]
      tm: rows of the flattened B*T axis per grid step (multiple of 8).
          Auto-picked to fit a conservative VMEM budget if None.  On v7x
          (64 MiB VMEM) prefer roughly half the v6e/v5e value.
      compute_dtype: optional cast for x/w before the MXU matmul
          (e.g. jnp.bfloat16 on v5e); accumulation stays f32.
    """
    B, T, H, I = x.shape
    Hw, Iw, J = w.shape
    assert (Hw, Iw) == (H, I)
    assert b.shape == (H, J)

    M = B * T
    HI = H * I
    HJ = H * J

    # ---- choose tm: big enough to pipeline, small enough for VMEM ---------
    itemsize = jnp.dtype(compute_dtype or x.dtype).itemsize
    if tm is None:
        bytes_per_row = (HI * itemsize + HJ * jnp.dtype(x.dtype).itemsize)
        budget = 12 * 1024 * 1024  # headroom under default scoped VMEM (all gens)
        tm = min(1024, max(8, budget // (2 * bytes_per_row)))  # x2 double buffer
        tm = max(8, (tm // 8) * 8)
    tm = min(tm, M)
    if tm < M:
        tm = max(8, (tm // 8) * 8)  # (8,128) block constraint
    grid_m = pl.cdiv(M, tm)  # ragged M: last partial block is masked by Pallas

    # ---- layout glue (no HBM relayout: contiguous reshapes only) ----------
    x2 = x.reshape(M, HI)
    # Block-diagonal dense weight [H*I, H*J]: row h*I+i, col h*J+j = w[h,i,j].
    w_bd = (jnp.eye(H, dtype=w.dtype)[:, None, :, None]
            * w[:, :, None, :]).reshape(HI, HJ)
    b2 = b.reshape(1, HJ)

    if compute_dtype is not None:
        x2 = x2.astype(compute_dtype)
        w_bd = w_bd.astype(compute_dtype)

    out = pl.pallas_call(
        _block_diag_matmul_kernel,
        out_shape=jax.ShapeDtypeStruct((M, HJ), x.dtype),
        grid=(grid_m,),
        in_specs=[
            pl.BlockSpec((tm, HI), lambda m: (m, 0)),   # streamed over M
            pl.BlockSpec((HI, HJ), lambda m: (0, 0)),   # resident weight
            pl.BlockSpec((1, HJ), lambda m: (0, 0)),    # resident bias
        ],
        out_specs=pl.BlockSpec((tm, HJ), lambda m: (m, 0)),
        compiler_params=pltpu.CompilerParams(
            dimension_semantics=("parallel",),  # megacore-splittable M axis
        ),
    )(x2, w_bd, b2)

    return out.reshape(B, T, H, J)


def init_params(key, num_heads, in_width, out_width, w_init_variance_scale=1.0):
    """Deterministic synthetic init matching the module's parameter shapes."""
    kw, kb = jax.random.split(key)
    std = (w_init_variance_scale / in_width) ** 0.5
    w = std * jax.random.normal(kw, (num_heads, in_width, out_width), jnp.float32)
    b = 0.01 * jax.random.normal(kb, (num_heads, out_width), jnp.float32)
    return w, b


if __name__ == "__main__":
    # Small shapes consistent with the module: eqn "... h i, h i j -> ... h j"
    B, T, H, I, J = 2, 8, 4, 32, 32

    key = jax.random.PRNGKey(0)
    kx, kp = jax.random.split(key)
    x = jax.random.normal(kx, (B, T, H, I), jnp.float32)
    w, b = init_params(kp, H, I, J)

    out = block_diag_einsum(x, w, b)
    out = jax.block_until_ready(out)

    # Reference: exactly the PyTorch forward semantics.
    ref = jnp.einsum("...hi,hij->...hj", x, w) + b
    assert out.shape == ref.shape == (B, T, H, J)
    assert jnp.allclose(out, ref, atol=1e-5, rtol=1e-5), float(
        jnp.max(jnp.abs(out - ref))
    )

    # Also exercise a ragged / multi-tile M path (cdiv grid + masked last tile).
    B2, T2 = 3, 7
    x2 = jax.random.normal(jax.random.PRNGKey(1), (B2, T2, H, I), jnp.float32)
    out2 = jax.block_until_ready(block_diag_einsum(x2, w, b, tm=8))
    ref2 = jnp.einsum("...hi,hij->...hj", x2, w) + b
    assert jnp.allclose(out2, ref2, atol=1e-5, rtol=1e-5), float(
        jnp.max(jnp.abs(out2 - ref2))
    )

    print("KERNEL_OK")
</pallas_src>

<mosaic_0001>
module attributes {stable_mosaic.version = 11 : i64} {
  func.func @_block_diag_matmul_kernel(%arg0: i32, %arg1: memref<16x128xf32, #tpu.memory_space<vmem>>, %arg2: memref<128x128xf32, #tpu.memory_space<vmem>>, %arg3: memref<1x128xf32, #tpu.memory_space<vmem>>, %arg4: memref<16x128xf32, #tpu.memory_space<vmem>>) attributes {dimension_semantics = [#tpu.dimension_semantics<parallel>], iteration_bounds = array<i64: 1>, scalar_prefetch = 0 : i64, scratch_operands = 0 : i64, tpu.core_type = #tpu.core_type<tc>, window_params = [{transform_indices = @transform_0, window_bounds = array<i64: 16, 128>}, {pipeline_mode = #tpu.pipeline_mode<synchronous>, transform_indices = @transform_1, window_bounds = array<i64: 128, 128>}, {pipeline_mode = #tpu.pipeline_mode<synchronous>, transform_indices = @transform_2, window_bounds = array<i64: 1, 128>}, {transform_indices = @transform_3, window_bounds = array<i64: 16, 128>}]} {
    %c0 = arith.constant 0 : index
    %c0_0 = arith.constant 0 : index
    %0 = vector.load %arg1[%c0, %c0_0] : memref<16x128xf32, #tpu.memory_space<vmem>>, vector<16x128xf32>
    %c0_1 = arith.constant 0 : index
    %c0_2 = arith.constant 0 : index
    %1 = vector.load %arg2[%c0_1, %c0_2] : memref<128x128xf32, #tpu.memory_space<vmem>>, vector<128x128xf32>
    %cst = arith.constant dense<0.000000e+00> : vector<16x128xf32>
    %2 = tpu.matmul %0, %1, %cst {dimension_numbers = #tpu.dot_dimension_numbers<[1], [0], [0], [1], [0, 0, 1, 1], [], []>} : vector<16x128xf32>, vector<128x128xf32>, vector<16x128xf32> -> vector<16x128xf32>
    %c0_3 = arith.constant 0 : index
    %c0_4 = arith.constant 0 : index
    %3 = vector.load %arg3[%c0_3, %c0_4] : memref<1x128xf32, #tpu.memory_space<vmem>>, vector<1x128xf32>
    %4 = vector.broadcast %3 : vector<1x128xf32> to vector<16x128xf32>
    %5 = arith.addf %2, %4 : vector<16x128xf32>
    %c0_5 = arith.constant 0 : index
    %c0_6 = arith.constant 0 : index
    %6 = vector.load %arg4[%c0_5, %c0_6] : memref<16x128xf32, #tpu.memory_space<vmem>>, vector<16x128xf32>
    tpu.vector_store %arg4[%c0_5, %c0_6], %5 {strides = array<i32>} : memref<16x128xf32, #tpu.memory_space<vmem>>, vector<16x128xf32>,
    return
  }
  func.func @transform_0(%arg0: i32) -> (i32, i32) {
    %c0_i32 = arith.constant 0 : i32
    %c0_i32_0 = arith.constant 0 : i32
    return %arg0, %c0_i32 : i32, i32
  }
  func.func @transform_1(%arg0: i32) -> (i32, i32) {
    %c0_i32 = arith.constant 0 : i32
    %c0_i32_0 = arith.constant 0 : i32
    %c0_i32_1 = arith.constant 0 : i32
    return %c0_i32, %c0_i32_0 : i32, i32
  }
  func.func @transform_2(%arg0: i32) -> (i32, i32) {
    %c0_i32 = arith.constant 0 : i32
    %c0_i32_0 = arith.constant 0 : i32
    %c0_i32_1 = arith.constant 0 : i32
    return %c0_i32, %c0_i32_0 : i32, i32
  }
  func.func @transform_3(%arg0: i32) -> (i32, i32) {
    %c0_i32 = arith.constant 0 : i32
    %c0_i32_0 = arith.constant 0 : i32
    return %arg0, %c0_i32 : i32, i32
  }
}

</mosaic_0001>

<llo_original>
// kernel: block_diag_einsum.1
$region0: #{block_diag_einsum.1}
  #allocation0 [shape = 'u32[]', space=smem, size = 0x4, offset = 0x4, fixed_abs, tag = 'smem constant byte address 0x4 - core index']
  #allocation1 [shape = 'u32[144,128]{1,0:T(1,128)}', space=vmem, size = 0x12000, scoped, tag = 'internal scratch']
  %s0 = inlined_call_operand.vmem [shape: f32[16,128], index: 0, kind: input, shape index: {}]
  %s1 = inlined_call_operand.vmem [shape: f32[128,128], index: 1, kind: input, shape index: {}]
  %s2 = inlined_call_operand.vmem [shape: f32[1,128], index: 2, kind: input, shape index: {}]
  %s3 = inlined_call_operand.vmem [shape: f32[16,128], index: 3, kind: output, shape index: {}]
  %s4 = sld [smem:[#allocation0]]
  $region22: #{block_diag_einsum.1} parent=0
    _
  %s6 = ssub.s32 1, %s4
  %s7 = scalar_select 0, %s6, %s4
  // Predicated region
  $region2: #{block_diag_einsum.1} parent=0 // pred_check
    _
  $region3: #{block_diag_einsum.1} parent=0 // pred_check_branch
    %9 = sbr.rel (0) target = $region5
  $region4: #{block_diag_einsum.1} parent=0 // pred_region
    _
  $region5: #{block_diag_einsum.1} parent=0 // pred_fallthru
    _
  // Predicated region
  $region6: #{block_diag_einsum.1} parent=0 // pred_check
    _
  $region7: #{block_diag_einsum.1} parent=0 // pred_check_branch
    %11 = sbr.rel (0) target = $region9
  $region8: #{block_diag_einsum.1} parent=0 // pred_region
    _
  $region9: #{block_diag_einsum.1} parent=0 // pred_fallthru
    _
  // Predicated region
  $region10: #{block_diag_einsum.1} parent=0 // pred_check
    _
  $region11: #{block_diag_einsum.1} parent=0 // pred_check_branch
    %13 = sbr.rel (0) target = $region13
  $region12: #{block_diag_einsum.1} parent=0 // pred_region
    _
  $region13: #{block_diag_einsum.1} parent=0 // pred_fallthru
    _
  %v14 = vld [vmem:[%s0] sm:$0xff]
  %v15 = vld [vmem:[%s0 + $0x8] sm:$0xff]
  %v16 = vld [vmem:[%s1] sm:$0xff]
  %v17 = vld [vmem:[%s1 + $0x8] sm:$0xff]
  %v18 = vld [vmem:[%s1 + $0x10] sm:$0xff]
  %v19 = vld [vmem:[%s1 + $0x18] sm:$0xff]
  %v20 = vld [vmem:[%s1 + $0x20] sm:$0xff]
  %v21 = vld [vmem:[%s1 + $0x28] sm:$0xff]
  %v22 = vld [vmem:[%s1 + $0x30] sm:$0xff]
  %v23 = vld [vmem:[%s1 + $0x38] sm:$0xff]
  %v24 = vld [vmem:[%s1 + $0x40] sm:$0xff]
  %v25 = vld [vmem:[%s1 + $0x48] sm:$0xff]
  %v26 = vld [vmem:[%s1 + $0x50] sm:$0xff]
  %v27 = vld [vmem:[%s1 + $0x58] sm:$0xff]
  %v28 = vld [vmem:[%s1 + $0x60] sm:$0xff]
  %v29 = vld [vmem:[%s1 + $0x68] sm:$0xff]
  %v30 = vld [vmem:[%s1 + $0x70] sm:$0xff]
  %v31 = vld [vmem:[%s1 + $0x78] sm:$0xff]
  %v32 = vld [vmem:[%s2] sm:$0x1]
  %v34 = vlaneseq
  %v35 = vshrl.u32 %v34, 7
  %v36 = vsub.s32 0, %v35
  %v37 = vrot.slane %v32, %v36
  %39 = vmatprep.subr.mxu0 0.0
  %40 = vmatpush1.msra.mxu0 %v16
  %41 = vmatprep.subr.mxu0 0.0
  %42 = vmatpush1.msra.mxu0 %v17
  %43 = vmatprep.subr.mxu0 0.0
  %44 = vmatpush1.msra.mxu0 %v18
  %45 = vmatprep.subr.mxu0 0.0
  %46 = vmatpush1.msra.mxu0 %v19
  %47 = vmatprep.subr.mxu0 0.0
  %48 = vmatpush1.msra.mxu0 %v20
  %49 = vmatprep.subr.mxu0 0.0
  %50 = vmatpush1.msra.mxu0 %v21
  %51 = vmatprep.subr.mxu0 0.0
  %52 = vmatpush1.msra.mxu0 %v22
  %53 = vmatprep.subr.mxu0 0.0
  %54 = vmatpush1.msra.mxu0 %v23
  %55 = vmatprep.subr.mxu0 0.0
  %56 = vmatpush1.msra.mxu0 %v24
  %57 = vmatprep.subr.mxu0 0.0
  %58 = vmatpush1.msra.mxu0 %v25
  %59 = vmatprep.subr.mxu0 0.0
  %60 = vmatpush1.msra.mxu0 %v26
  %61 = vmatprep.subr.mxu0 0.0
  %62 = vmatpush1.msra.mxu0 %v27
  %63 = vmatprep.subr.mxu0 0.0
  %64 = vmatpush1.msra.mxu0 %v28
  %65 = vmatprep.subr.mxu0 0.0
  %66 = vmatpush1.msra.mxu0 %v29
  %67 = vmatprep.subr.mxu0 0.0
  %68 = vmatpush1.msra.mxu0 %v30
  %69 = vmatprep.subr.mxu0 0.0
  %70 = vmatpush1.msra.mxu0 %v31
  %71 = vmatprep.subr.mxu0 0.0
  %72 = vmatpush1.msra.mxu0 0.0
  %73 = vmatprep.subr.mxu0 0.0
  %74 = vmatpush1.msra.mxu0 0.0
  %75 = vmatprep.subr.mxu0 0.0
  %76 = vmatpush1.msra.mxu0 0.0
  %77 = vmatprep.subr.mxu0 0.0
  %78 = vmatpush1.msra.mxu0 0.0
  %79 = vmatprep.subr.mxu0 0.0
  %80 = vmatpush1.msra.mxu0 0.0
  %81 = vmatprep.subr.mxu0 0.0
  %82 = vmatpush1.msra.mxu0 0.0
  %83 = vmatprep.subr.mxu0 0.0
  %84 = vmatpush1.msra.mxu0 0.0
  %85 = vmatprep.subr.mxu0 0.0
  %86 = vmatpush1.msra.mxu0 0.0
  %87 = vmatprep.subr.mxu0 0.0
  %88 = vmatpush1.msra.mxu0 0.0
  %89 = vmatprep.subr.mxu0 0.0
  %90 = vmatpush1.msra.mxu0 0.0
  %91 = vmatprep.subr.mxu0 0.0
  %92 = vmatpush1.msra.mxu0 0.0
  %93 = vmatprep.subr.mxu0 0.0
  %94 = vmatpush1.msra.mxu0 0.0
  %95 = vmatprep.subr.mxu0 0.0
  %96 = vmatpush1.msra.mxu0 0.0
  %97 = vmatprep.subr.mxu0 0.0
  %98 = vmatpush1.msra.mxu0 0.0
  %99 = vmatprep.subr.mxu0 0.0
  %100 = vmatpush1.msra.mxu0 0.0
  %101 = vmatprep.subr.mxu0 0.0
  %102 = vmatpush1.msra.mxu0 0.0
  %103 = vmatprep.mubr.f32.mxu0 0.0
  %104 = vmatmul.mubr.f32.gmra.mrb[0].mxu0 %v14
  %v105 = vpop.f32.mrb[0].mxu0
  %v106 = vadd.f32 %v37, %v105
  %v107 = vpop.f32.mrb[0].mxu0
  %108 = vmatprep.mubr.f32.mxu0 0.0
  %109 = vmatmul.mubr.f32.gmra.mrb[0].mxu0 %v15
  %v110 = vpop.f32.mrb[0].mxu0
  %v111 = vadd.f32 %v37, %v110
  %v112 = vpop.f32.mrb[0].mxu0
  %113 = vdwg.mxu0
  %114 = vst [vmem:[%s3] sm:$0xff] %v106
  %115 = vst [vmem:[%s3 + $0x8] sm:$0xff] %v111
  // Predicated region
  $region14: #{block_diag_einsum.1} parent=0 // pred_check
    _
  $region15: #{block_diag_einsum.1} parent=0 // pred_check_branch
    %117 = sbr.rel (0) target = $region17
  $region16: #{block_diag_einsum.1} parent=0 // pred_region
    _
  $region17: #{block_diag_einsum.1} parent=0 // pred_fallthru
    _
  // Predicated region
  $region18: #{block_diag_einsum.1} parent=0 // pred_check
    _
  $region19: #{block_diag_einsum.1} parent=0 // pred_check_branch
    %119 = sbr.rel (0) target = $region21
  $region20: #{block_diag_einsum.1} parent=0 // pred_region
    _
  $region21: #{block_diag_einsum.1} parent=0 // pred_fallthru
    _

</llo_original>
